<compile_context>
chip_gen: v7x
topology: tpu7x:2x2x1
jax: 0.10.0
libtpu: 0.0.40
codegen_flags: <defaults>
</compile_context>

<pallas_src>
import functools

import jax
import jax.numpy as jnp
from jax.experimental import pallas as pl
from jax.experimental.pallas import tpu as pltpu

P_VALUE = 1e-8


def _gumbel_sigmoid_kernel(x_ref, ux_ref, ur_ref, o_ref, *, tau, c):
    # Blocks: x_ref/ux_ref/ur_ref -> (1, C, T); o_ref -> (1, 2C, T).
    x = x_ref[0].astype(jnp.float32)                     # (C, T)
    r = 1.0 - x

    lx = jnp.log(x + P_VALUE)
    lr = jnp.log(r + P_VALUE)

    # Gumbel noise: -log(-log(U + p) + p)  (matches the double -log in torch).
    ux = ux_ref[0].astype(jnp.float32)
    ur = ur_ref[0].astype(jnp.float32)
    gx = -jnp.log(-jnp.log(ux + P_VALUE) + P_VALUE)
    gr = -jnp.log(-jnp.log(ur + P_VALUE) + P_VALUE)

    inv_tau = jnp.float32(1.0 / (tau + P_VALUE))
    zx = (lx + gx) * inv_tau
    zr = (lr + gr) * inv_tau

    # Softmax over the (virtual) concatenation of the two halves along the
    # channel axis -- computed without materializing the concat.
    m = jnp.maximum(jnp.max(zx, axis=0, keepdims=True),
                    jnp.max(zr, axis=0, keepdims=True))   # (1, T)
    ex = jnp.exp(zx - m)
    er = jnp.exp(zr - m)
    s = jnp.sum(ex, axis=0, keepdims=True) + jnp.sum(er, axis=0, keepdims=True)
    inv_s = 1.0 / s                                       # one (1, T) row

    o_ref[0, :c, :] = (ex * inv_s).astype(o_ref.dtype)
    o_ref[0, c:, :] = (er * inv_s).astype(o_ref.dtype)


def _pick_tile_hw(hw: int, max_tile: int = 2048) -> int:
    """Largest multiple-of-128 divisor of hw that is <= max_tile; else full hw."""
    if hw <= max_tile or hw % 128 != 0:
        return hw
    n128 = hw // 128
    best = 128
    for k in range(1, max_tile // 128 + 1):
        if n128 % k == 0:
            best = k * 128
    return best


def gumbel_sigmoid(x_nchw, noise_key, tau: float = 1.0):
    """x_nchw: (B, C, H, W) with probability-like values. Returns (B, 2C, H, W)."""
    B, C, H, W = x_nchw.shape
    HW = H * W
    x = x_nchw.reshape(B, C, HW)

    kx, kr = jax.random.split(noise_key)
    ux = jax.random.uniform(kx, (B, C, HW), dtype=jnp.float32)
    ur = jax.random.uniform(kr, (B, C, HW), dtype=jnp.float32)

    tile_hw = _pick_tile_hw(HW)
    n_tiles = HW // tile_hw

    in_spec = pl.BlockSpec((1, C, tile_hw), lambda b, j: (b, 0, j))
    out_spec = pl.BlockSpec((1, 2 * C, tile_hw), lambda b, j: (b, 0, j))

    out = pl.pallas_call(
        functools.partial(_gumbel_sigmoid_kernel, tau=float(tau), c=C),
        out_shape=jax.ShapeDtypeStruct((B, 2 * C, HW), x.dtype),
        grid=(B, n_tiles),
        in_specs=[in_spec, in_spec, in_spec],
        out_specs=out_spec,
        compiler_params=pltpu.CompilerParams(
            dimension_semantics=("parallel", "parallel"),
        ),
    )(x, ux, ur)

    return out.reshape(B, 2 * C, H, W)


if __name__ == "__main__":
    key = jax.random.PRNGKey(0)
    k_x, k_noise = jax.random.split(key)

    # Small NCHW input consistent with the module (probability-like values).
    x = jax.random.uniform(k_x, (2, 4, 16, 16), dtype=jnp.float32)

    out = gumbel_sigmoid(x, k_noise, tau=1.0)
    out = jax.block_until_ready(out)

    # Sanity: output shape (B, 2C, H, W), softmax over channels sums to 1.
    assert out.shape == (2, 8, 16, 16)
    sums = jnp.sum(out, axis=1)
    assert jnp.allclose(sums, 1.0, atol=1e-5)
    assert bool(jnp.all(out >= 0.0)) and bool(jnp.all(out <= 1.0))

    print("KERNEL_OK")
</pallas_src>

<mosaic_0001>
module attributes {stable_mosaic.version = 11 : i64} {
  func.func @_gumbel_sigmoid_kernel(%arg0: i32, %arg1: i32, %arg2: memref<1x4x256xf32, #tpu.memory_space<vmem>>, %arg3: memref<1x4x256xf32, #tpu.memory_space<vmem>>, %arg4: memref<1x4x256xf32, #tpu.memory_space<vmem>>, %arg5: memref<1x8x256xf32, #tpu.memory_space<vmem>>) attributes {dimension_semantics = [#tpu.dimension_semantics<parallel>, #tpu.dimension_semantics<parallel>], iteration_bounds = array<i64: 2, 1>, scalar_prefetch = 0 : i64, scratch_operands = 0 : i64, tpu.core_type = #tpu.core_type<tc>, window_params = [{transform_indices = @transform_0, window_bounds = array<i64: 1, 4, 256>}, {transform_indices = @transform_1, window_bounds = array<i64: 1, 4, 256>}, {transform_indices = @transform_2, window_bounds = array<i64: 1, 4, 256>}, {transform_indices = @transform_3, window_bounds = array<i64: 1, 8, 256>}]} {
    %c0 = arith.constant 0 : index
    %c0_0 = arith.constant 0 : index
    %c0_1 = arith.constant 0 : index
    %0 = vector.load %arg2[%c0, %c0_0, %c0_1] : memref<1x4x256xf32, #tpu.memory_space<vmem>>, vector<1x4x256xf32>
    %1 = vector.shape_cast %0 : vector<1x4x256xf32> to vector<4x256xf32>
    %cst = arith.constant 1.000000e+00 : f32
    %2 = vector.broadcast %cst : f32 to vector<4x256xf32>
    %3 = arith.subf %2, %1 : vector<4x256xf32>
    %cst_2 = arith.constant 9.99999993E-9 : f32
    %4 = vector.broadcast %cst_2 : f32 to vector<4x256xf32>
    %5 = arith.addf %1, %4 : vector<4x256xf32>
    %6 = math.log %5 : vector<4x256xf32>
    %cst_3 = arith.constant 9.99999993E-9 : f32
    %7 = vector.broadcast %cst_3 : f32 to vector<4x256xf32>
    %8 = arith.addf %3, %7 : vector<4x256xf32>
    %9 = math.log %8 : vector<4x256xf32>
    %c0_4 = arith.constant 0 : index
    %c0_5 = arith.constant 0 : index
    %c0_6 = arith.constant 0 : index
    %10 = vector.load %arg3[%c0_4, %c0_5, %c0_6] : memref<1x4x256xf32, #tpu.memory_space<vmem>>, vector<1x4x256xf32>
    %11 = vector.shape_cast %10 : vector<1x4x256xf32> to vector<4x256xf32>
    %c0_7 = arith.constant 0 : index
    %c0_8 = arith.constant 0 : index
    %c0_9 = arith.constant 0 : index
    %12 = vector.load %arg4[%c0_7, %c0_8, %c0_9] : memref<1x4x256xf32, #tpu.memory_space<vmem>>, vector<1x4x256xf32>
    %13 = vector.shape_cast %12 : vector<1x4x256xf32> to vector<4x256xf32>
    %cst_10 = arith.constant 9.99999993E-9 : f32
    %14 = vector.broadcast %cst_10 : f32 to vector<4x256xf32>
    %15 = arith.addf %11, %14 : vector<4x256xf32>
    %16 = math.log %15 : vector<4x256xf32>
    %cst_11 = arith.constant 0.000000e+00 : f32
    %17 = vector.broadcast %cst_11 : f32 to vector<4x256xf32>
    %18 = arith.subf %17, %16 : vector<4x256xf32>
    %cst_12 = arith.constant 9.99999993E-9 : f32
    %19 = vector.broadcast %cst_12 : f32 to vector<4x256xf32>
    %20 = arith.addf %18, %19 : vector<4x256xf32>
    %21 = math.log %20 : vector<4x256xf32>
    %cst_13 = arith.constant 0.000000e+00 : f32
    %22 = vector.broadcast %cst_13 : f32 to vector<4x256xf32>
    %23 = arith.subf %22, %21 : vector<4x256xf32>
    %cst_14 = arith.constant 9.99999993E-9 : f32
    %24 = vector.broadcast %cst_14 : f32 to vector<4x256xf32>
    %25 = arith.addf %13, %24 : vector<4x256xf32>
    %26 = math.log %25 : vector<4x256xf32>
    %cst_15 = arith.constant 0.000000e+00 : f32
    %27 = vector.broadcast %cst_15 : f32 to vector<4x256xf32>
    %28 = arith.subf %27, %26 : vector<4x256xf32>
    %cst_16 = arith.constant 9.99999993E-9 : f32
    %29 = vector.broadcast %cst_16 : f32 to vector<4x256xf32>
    %30 = arith.addf %28, %29 : vector<4x256xf32>
    %31 = math.log %30 : vector<4x256xf32>
    %cst_17 = arith.constant 0.000000e+00 : f32
    %32 = vector.broadcast %cst_17 : f32 to vector<4x256xf32>
    %33 = arith.subf %32, %31 : vector<4x256xf32>
    %34 = arith.addf %6, %23 : vector<4x256xf32>
    %cst_18 = arith.constant 1.000000e+00 : f32
    %35 = vector.broadcast %cst_18 : f32 to vector<4x256xf32>
    %36 = arith.mulf %34, %35 : vector<4x256xf32>
    %37 = arith.addf %9, %33 : vector<4x256xf32>
    %cst_19 = arith.constant 1.000000e+00 : f32
    %38 = vector.broadcast %cst_19 : f32 to vector<4x256xf32>
    %39 = arith.mulf %37, %38 : vector<4x256xf32>
    %cst_20 = arith.constant dense<0xFF800000> : vector<256xf32>
    %40 = vector.multi_reduction <maximumf>, %36, %cst_20 [0] : vector<4x256xf32> to vector<256xf32>
    %41 = vector.shape_cast %40 : vector<256xf32> to vector<1x256xf32>
    %cst_21 = arith.constant dense<0xFF800000> : vector<256xf32>
    %42 = vector.multi_reduction <maximumf>, %39, %cst_21 [0] : vector<4x256xf32> to vector<256xf32>
    %43 = vector.shape_cast %42 : vector<256xf32> to vector<1x256xf32>
    %44 = arith.maximumf %41, %43 : vector<1x256xf32>
    %45 = vector.broadcast %44 : vector<1x256xf32> to vector<4x256xf32>
    %46 = arith.subf %36, %45 : vector<4x256xf32>
    %47 = math.exp %46 : vector<4x256xf32>
    %48 = vector.broadcast %44 : vector<1x256xf32> to vector<4x256xf32>
    %49 = arith.subf %39, %48 : vector<4x256xf32>
    %50 = math.exp %49 : vector<4x256xf32>
    %cst_22 = arith.constant dense<0.000000e+00> : vector<256xf32>
    %51 = vector.multi_reduction <add>, %47, %cst_22 [0] : vector<4x256xf32> to vector<256xf32>
    %52 = vector.shape_cast %51 : vector<256xf32> to vector<1x256xf32>
    %cst_23 = arith.constant dense<0.000000e+00> : vector<256xf32>
    %53 = vector.multi_reduction <add>, %50, %cst_23 [0] : vector<4x256xf32> to vector<256xf32>
    %54 = vector.shape_cast %53 : vector<256xf32> to vector<1x256xf32>
    %55 = arith.addf %52, %54 : vector<1x256xf32>
    %cst_24 = arith.constant 1.000000e+00 : f32
    %56 = vector.broadcast %cst_24 : f32 to vector<1x256xf32>
    %57 = arith.divf %56, %55 : vector<1x256xf32>
    %58 = vector.broadcast %57 : vector<1x256xf32> to vector<4x256xf32>
    %59 = arith.mulf %47, %58 : vector<4x256xf32>
    %c0_25 = arith.constant 0 : index
    %c0_26 = arith.constant 0 : index
    %c0_27 = arith.constant 0 : index
    %60 = vector.load %arg5[%c0_25, %c0_26, %c0_27] : memref<1x8x256xf32, #tpu.memory_space<vmem>>, vector<1x4x256xf32>
    %61 = vector.shape_cast %60 : vector<1x4x256xf32> to vector<4x256xf32>
    %62 = vector.shape_cast %59 : vector<4x256xf32> to vector<1x4x256xf32>
    tpu.vector_store %arg5[%c0_25, %c0_26, %c0_27], %62 {strides = array<i32>} : memref<1x8x256xf32, #tpu.memory_space<vmem>>, vector<1x4x256xf32>,
    %63 = vector.broadcast %57 : vector<1x256xf32> to vector<4x256xf32>
    %64 = arith.mulf %50, %63 : vector<4x256xf32>
    %c0_28 = arith.constant 0 : index
    %c4 = arith.constant 4 : index
    %c0_29 = arith.constant 0 : index
    %65 = vector.load %arg5[%c0_28, %c4, %c0_29] : memref<1x8x256xf32, #tpu.memory_space<vmem>>, vector<1x4x256xf32>
    %66 = vector.shape_cast %65 : vector<1x4x256xf32> to vector<4x256xf32>
    %67 = vector.shape_cast %64 : vector<4x256xf32> to vector<1x4x256xf32>
    tpu.vector_store %arg5[%c0_28, %c4, %c0_29], %67 {strides = array<i32>} : memref<1x8x256xf32, #tpu.memory_space<vmem>>, vector<1x4x256xf32>,
    return
  }
  func.func @transform_0(%arg0: i32, %arg1: i32) -> (i32, i32, i32) {
    %c0_i32 = arith.constant 0 : i32
    %c0_i32_0 = arith.constant 0 : i32
    return %arg0, %c0_i32, %arg1 : i32, i32, i32
  }
  func.func @transform_1(%arg0: i32, %arg1: i32) -> (i32, i32, i32) {
    %c0_i32 = arith.constant 0 : i32
    %c0_i32_0 = arith.constant 0 : i32
    return %arg0, %c0_i32, %arg1 : i32, i32, i32
  }
  func.func @transform_2(%arg0: i32, %arg1: i32) -> (i32, i32, i32) {
    %c0_i32 = arith.constant 0 : i32
    %c0_i32_0 = arith.constant 0 : i32
    return %arg0, %c0_i32, %arg1 : i32, i32, i32
  }
  func.func @transform_3(%arg0: i32, %arg1: i32) -> (i32, i32, i32) {
    %c0_i32 = arith.constant 0 : i32
    %c0_i32_0 = arith.constant 0 : i32
    return %arg0, %c0_i32, %arg1 : i32, i32, i32
  }
}

</mosaic_0001>

<llo_original>
// kernel: tpu_custom_call.1
$region0: #{tpu_custom_call.1}
  #allocation0 [shape = 'u32[]', space=smem, size = 0x4, offset = 0x4, fixed_abs, tag = 'smem constant byte address 0x4 - core index']
  #allocation1 [shape = 'u32[144,128]{1,0:T(1,128)}', space=vmem, size = 0x12000, scoped, tag = 'internal scratch']
  %s0 = inlined_call_operand.hbm [shape: f32[2,4,256], index: 0, kind: input, shape index: {}]
  %s1 = inlined_call_operand.hbm [shape: f32[2,4,256], index: 1, kind: input, shape index: {}]
  %s2 = inlined_call_operand.hbm [shape: f32[2,4,256], index: 2, kind: input, shape index: {}]
  %s3 = inlined_call_operand.hbm [shape: f32[2,8,256], index: 3, kind: output, shape index: {}]
  %s4 = sld [smem:[#allocation0]]
  $region57: #{tpu_custom_call.1} parent=0
    _
  %s6 = ssub.s32 1, %s4
  %s7 = scalar_select 0, %s6, %s4
  $region1: #{tpu_custom_call.1} parent=0
    #allocation2 [shape = 'u8[8192]{0}', space=vmem, size = 0x2000, scoped, tag = 'input window, operand 0']
    #allocation3 [shape = 's32[2]{0}', space=sflag, size = 0x8, scoped, tag = 'scoped memory for tpu_custom_call.1']
    #allocation4 [shape = 's32[2]{0}', space=sflag, size = 0x8, scoped, tag = 'scoped memory for tpu_custom_call.1']
    #allocation5 [shape = 'u8[8192]{0}', space=vmem, size = 0x2000, scoped, tag = 'input window, operand 1']
    #allocation6 [shape = 's32[2]{0}', space=sflag, size = 0x8, scoped, tag = 'scoped memory for tpu_custom_call.1']
    #allocation7 [shape = 'u8[8192]{0}', space=vmem, size = 0x2000, scoped, tag = 'input window, operand 2']
    #allocation8 [shape = 'u8[16384]{0}', space=vmem, size = 0x4000, scoped, tag = 'output window, operand 0']
    %8 = vsyncpa [#allocation3], 0
    %s9 = scalar_lea.sflag [#allocation3], 1
    %10 = vsyncpa %s9, 0
    %11 = vsyncpa [#allocation6], 0
    %s12 = scalar_lea.sflag [#allocation6], 1
    %13 = vsyncpa %s12, 0
    %14 = vsyncpa [#allocation4], 0
    %s15 = scalar_lea.sflag [#allocation4], 1
    %16 = vsyncpa %s15, 0
    loop: start=0, step=1, limit=4
    $region2: #{tpu_custom_call.1} parent=1 // loop_pre_header
      _
    $region3: #{tpu_custom_call.1} parent=1 // loop_header
      %s18 = sphi 0, %s22
      %p19 = scmp.ge.s32.totalorder %s18, 4
      %s25 = sphi 0, %s37
      %s26 = sphi 0, %s33
      %s27 = sphi 0, %s25
      %s28 = sphi 0, %s26
      %s29 = sphi 0, %s27
      %s30 = sphi 0, %s28
      %s42 = sphi 0, %s44
      %s45 = sphi 0, %s42
      %s46 = sphi 0, %s45
      %s62 = sphi 0, %s46
      %s70 = sphi 0, %s72
      %s73 = sphi 0, %s70
      %s74 = sphi 0, %s73
      %s90 = sphi 0, %s74
      %s98 = sphi 0, %s100
      %s101 = sphi 0, %s98
      %s102 = sphi 0, %s101
      %s118 = sphi 0, %s102
      %s126 = sphi 0, %s128
      %s129 = sphi 0, %s126
      %s130 = sphi 0, %s129
      %s146 = sphi 0, %s130
    $region4: #{tpu_custom_call.1} parent=1 // loop_header_branch
      %21 = sbr.rel (%p19) target = $region8
    $region5: #{tpu_custom_call.1} parent=1 // loop_body
      %s23 = ssub.s32 %s18, 1
      %s24 = ssub.s32 %s18, 2
      %s31 = sadd.s32 1, %s26
      %p32 = scmp.ge.s32.totalorder %s31, 1
      %s33 = scalar_select %p32, 0, %s31
      %s34 = sadd.s32 1, %s25
      %s35 = scalar_select %p32, %s34, %s25
      %p36 = scmp.ge.s32.totalorder %s35, 2
      %s37 = scalar_select %p36, 0, %s35
      %s38 = ssub.s32 %s25, %s37
      %s39 = ssub.s32 %s26, %s33
      %s40 = sor.u32 %s38, %s39
      %p41 = scmp.eq.s32.totalorder %s40, 0
      %s43 = sadd.s32 %s42, 1
      %s44 = scalar_select %p41, %s42, %s43
      %p47 = pneg %p41
      %p48 = scmp.eq.s32.totalorder %s18, 1
      %p49 = por %p47, %p48
      %p50 = scmp.ne.s32.totalorder %s42, %s45
      %p51 = scmp.eq.s32.totalorder %s18, 0
      %p52 = por %p50, %p51
      %p53 = scmp.ne.s32.totalorder %s42, %s45
      %p54 = scmp.eq.s32.totalorder %s23, 1
      %p55 = por %p53, %p54
      %p56 = scmp.ne.s32.totalorder %s45, %s46
      %p57 = scmp.eq.s32.totalorder %s23, 0
      %p58 = por %p56, %p57
      %p59 = scmp.ne.s32.totalorder %s45, %s46
      %p60 = scmp.eq.s32.totalorder %s24, 1
      %p61 = por %p59, %p60
      %p63 = scmp.ne.s32.totalorder %s46, %s62
      %p64 = scmp.eq.s32.totalorder %s24, 0
      %p65 = por %p63, %p64
      %s66 = ssub.s32 %s25, %s37
      %s67 = ssub.s32 %s26, %s33
      %s68 = sor.u32 %s66, %s67
      %p69 = scmp.eq.s32.totalorder %s68, 0
      %s71 = sadd.s32 %s70, 1
      %s72 = scalar_select %p69, %s70, %s71
      %p75 = pneg %p69
      %p76 = scmp.eq.s32.totalorder %s18, 1
      %p77 = por %p75, %p76
      %p78 = scmp.ne.s32.totalorder %s70, %s73
      %p79 = scmp.eq.s32.totalorder %s18, 0
      %p80 = por %p78, %p79
      %p81 = scmp.ne.s32.totalorder %s70, %s73
      %p82 = scmp.eq.s32.totalorder %s23, 1
      %p83 = por %p81, %p82
      %p84 = scmp.ne.s32.totalorder %s73, %s74
      %p85 = scmp.eq.s32.totalorder %s23, 0
      %p86 = por %p84, %p85
      %p87 = scmp.ne.s32.totalorder %s73, %s74
      %p88 = scmp.eq.s32.totalorder %s24, 1
      %p89 = por %p87, %p88
      %p91 = scmp.ne.s32.totalorder %s74, %s90
      %p92 = scmp.eq.s32.totalorder %s24, 0
      %p93 = por %p91, %p92
      %s94 = ssub.s32 %s25, %s37
      %s95 = ssub.s32 %s26, %s33
      %s96 = sor.u32 %s94, %s95
      %p97 = scmp.eq.s32.totalorder %s96, 0
      %s99 = sadd.s32 %s98, 1
      %s100 = scalar_select %p97, %s98, %s99
      %p103 = pneg %p97
      %p104 = scmp.eq.s32.totalorder %s18, 1
      %p105 = por %p103, %p104
      %p106 = scmp.ne.s32.totalorder %s98, %s101
      %p107 = scmp.eq.s32.totalorder %s18, 0
      %p108 = por %p106, %p107
      %p109 = scmp.ne.s32.totalorder %s98, %s101
      %p110 = scmp.eq.s32.totalorder %s23, 1
      %p111 = por %p109, %p110
      %p112 = scmp.ne.s32.totalorder %s101, %s102
      %p113 = scmp.eq.s32.totalorder %s23, 0
      %p114 = por %p112, %p113
      %p115 = scmp.ne.s32.totalorder %s101, %s102
      %p116 = scmp.eq.s32.totalorder %s24, 1
      %p117 = por %p115, %p116
      %p119 = scmp.ne.s32.totalorder %s102, %s118
      %p120 = scmp.eq.s32.totalorder %s24, 0
      %p121 = por %p119, %p120
      %s122 = ssub.s32 %s25, %s37
      %s123 = ssub.s32 %s26, %s33
      %s124 = sor.u32 %s122, %s123
      %p125 = scmp.eq.s32.totalorder %s124, 0
      %s127 = sadd.s32 %s126, 1
      %s128 = scalar_select %p125, %s126, %s127
      %p131 = pneg %p125
      %p132 = scmp.eq.s32.totalorder %s18, 1
      %p133 = por %p131, %p132
      %p134 = scmp.ne.s32.totalorder %s126, %s129
      %p135 = scmp.eq.s32.totalorder %s18, 0
      %p136 = por %p134, %p135
      %p137 = scmp.ne.s32.totalorder %s126, %s129
      %p138 = scmp.eq.s32.totalorder %s23, 1
      %p139 = por %p137, %p138
      %p140 = scmp.ne.s32.totalorder %s129, %s130
      %p141 = scmp.eq.s32.totalorder %s23, 0
      %p142 = por %p140, %p141
      %p143 = scmp.ne.s32.totalorder %s129, %s130
      %p144 = scmp.eq.s32.totalorder %s24, 1
      %p145 = por %p143, %p144
      %p147 = scmp.ne.s32.totalorder %s130, %s146
      %p148 = scmp.eq.s32.totalorder %s24, 0
      %p149 = por %p147, %p148
      %p150 = scmp.le.s32.totalorder 1, %s18
      %p151 = scmp.lt.s32.totalorder %s18, 3
      %p152 = pnand %p150, %p151
      %p153 = pneg %p152
      // Predicated region
      $region9: #{tpu_custom_call.1} parent=5 // pred_check
        _
      $region10: #{tpu_custom_call.1} parent=5 // pred_check_branch
        %155 = sbr.rel (%p152) target = $region12
      $region11: #{tpu_custom_call.1} parent=5 // pred_region
        %s156 = ssub.s32 %s18, 1
      $region12: #{tpu_custom_call.1} parent=5 // pred_fallthru
        _
      %p157 = scmp.lt.s32.totalorder %s18, 2
      // Predicated region
      $region13: #{tpu_custom_call.1} parent=5 // pred_check
        %p158 = pneg %p157
      $region14: #{tpu_custom_call.1} parent=5 // pred_check_branch
        %160 = sbr.rel (%p158) target = $region16
      $region15: #{tpu_custom_call.1} parent=5 // pred_region
        // Predicated region
        $region17: #{tpu_custom_call.1} parent=15 // pred_check
          %p161 = pneg %p52
        $region18: #{tpu_custom_call.1} parent=15 // pred_check_branch
          %163 = sbr.rel (%p161) target = $region20
        $region19: #{tpu_custom_call.1} parent=15 // pred_region
          %s164 = sand.u32 %s42, 1
          %s165 = scalar_lea.sflag [#allocation3], %s164
          %s166 = sand.u32 %s42, 1
          %s167 = smul.addr %s166, 8
          %s168 = scalar_lea.vmem [#allocation2], %s167
          %s169 = smul.u32 2, %s26
          %s171 = ssub.s32 128, 128
          %172 = vsyncadd %s165, %s171
          %s173 = smul.addr %s25, 2
          %s174 = sadd.s32 %s169, %s173
          %s175 = smul.addr %s174, 64
          %s176 = scalar_lea.hbm %s0, %s175
          %s178 = sshll.u32 %s168, 4
          %s179 = int_to_ptr.vmem [resolvable:$true] %s178
          %181 = dma.hbm_to_vmem [thread:$0]  %s176, 128, %s179, %s165
        $region20: #{tpu_custom_call.1} parent=15 // pred_fallthru
          _
        // Predicated region
        $region21: #{tpu_custom_call.1} parent=15 // pred_check
          %p182 = pneg %p80
        $region22: #{tpu_custom_call.1} parent=15 // pred_check_branch
          %184 = sbr.rel (%p182) target = $region24
        $region23: #{tpu_custom_call.1} parent=15 // pred_region
          %s185 = sand.u32 %s18, 1
          %s186 = scalar_lea.sflag [#allocation6], %s185
          %s187 = sand.u32 %s70, 1
          %s188 = smul.addr %s187, 8
          %s189 = scalar_lea.vmem [#allocation5], %s188
          %s190 = smul.u32 2, %s26
          %s192 = ssub.s32 128, 128
          %193 = vsyncadd %s186, %s192
          %s194 = smul.addr %s25, 2
          %s195 = sadd.s32 %s190, %s194
          %s196 = smul.addr %s195, 64
          %s197 = scalar_lea.hbm %s1, %s196
          %s199 = sshll.u32 %s189, 4
          %s200 = int_to_ptr.vmem [resolvable:$true] %s199
          %202 = dma.hbm_to_vmem [thread:$0]  %s197, 128, %s200, %s186
        $region24: #{tpu_custom_call.1} parent=15 // pred_fallthru
          _
        // Predicated region
        $region25: #{tpu_custom_call.1} parent=15 // pred_check
          %p203 = pneg %p108
        $region26: #{tpu_custom_call.1} parent=15 // pred_check_branch
          %205 = sbr.rel (%p203) target = $region28
        $region27: #{tpu_custom_call.1} parent=15 // pred_region
          %s206 = sand.u32 %s18, 1
          %s207 = scalar_lea.sflag [#allocation6], %s206
          %s208 = sand.u32 %s98, 1
          %s209 = smul.addr %s208, 8
          %s210 = scalar_lea.vmem [#allocation7], %s209
          %s211 = smul.u32 2, %s26
          %s213 = ssub.s32 128, 128
          %214 = vsyncadd %s207, %s213
          %s215 = smul.addr %s25, 2
          %s216 = sadd.s32 %s211, %s215
          %s217 = smul.addr %s216, 64
          %s218 = scalar_lea.hbm %s2, %s217
          %s220 = sshll.u32 %s210, 4
          %s221 = int_to_ptr.vmem [resolvable:$true] %s220
          %223 = dma.hbm_to_vmem [thread:$0]  %s218, 128, %s221, %s207
        $region28: #{tpu_custom_call.1} parent=15 // pred_fallthru
          _
      $region16: #{tpu_custom_call.1} parent=5 // pred_fallthru
        _
      %p224 = scmp.le.s32.totalorder 1, %s18
      %p225 = scmp.lt.s32.totalorder %s18, 3
      %p226 = pnand %p224, %p225
      %p227 = pneg %p226
      // Predicated region
      $region29: #{tpu_custom_call.1} parent=5 // pred_check
        _
      $region30: #{tpu_custom_call.1} parent=5 // pred_check_branch
        %229 = sbr.rel (%p226) target = $region32
      $region31: #{tpu_custom_call.1} parent=5 // pred_region
        %s230 = ssub.s32 %s18, 1
        %s231 = sand.u32 %s45, 1
        %s232 = scalar_lea.sflag [#allocation3], %s231
        %s233 = sand.u32 %s45, 1
        %s234 = smul.addr %s233, 8
        %s235 = scalar_lea.vmem [#allocation2], %s234
        // Predicated region
        $region33: #{tpu_custom_call.1} parent=31 // pred_check
          %p236 = pneg %p58
        $region34: #{tpu_custom_call.1} parent=31 // pred_check_branch
          %238 = sbr.rel (%p236) target = $region36
        $region35: #{tpu_custom_call.1} parent=31 // pred_region
          %239 = dma.done %s232, 128
        $region36: #{tpu_custom_call.1} parent=31 // pred_fallthru
          _
        %s240 = sand.u32 %s23, 1
        %s241 = scalar_lea.sflag [#allocation6], %s240
        %s242 = sand.u32 %s73, 1
        %s243 = smul.addr %s242, 8
        %s244 = scalar_lea.vmem [#allocation5], %s243
        // Predicated region
        $region37: #{tpu_custom_call.1} parent=31 // pred_check
          %p245 = pneg %p86
        $region38: #{tpu_custom_call.1} parent=31 // pred_check_branch
          %247 = sbr.rel (%p245) target = $region40
        $region39: #{tpu_custom_call.1} parent=31 // pred_region
          %248 = dma.done %s241, 128
        $region40: #{tpu_custom_call.1} parent=31 // pred_fallthru
          _
        %s249 = sand.u32 %s23, 1
        %s250 = scalar_lea.sflag [#allocation6], %s249
        %s251 = sand.u32 %s101, 1
        %s252 = smul.addr %s251, 8
        %s253 = scalar_lea.vmem [#allocation7], %s252
        // Predicated region
        $region41: #{tpu_custom_call.1} parent=31 // pred_check
          %p254 = pneg %p114
        $region42: #{tpu_custom_call.1} parent=31 // pred_check_branch
          %256 = sbr.rel (%p254) target = $region44
        $region43: #{tpu_custom_call.1} parent=31 // pred_region
          %257 = dma.done %s250, 128
        $region44: #{tpu_custom_call.1} parent=31 // pred_fallthru
          _
        %s258 = sand.u32 %s45, 1
        %s259 = scalar_lea.sflag [#allocation3], %s258
        %s260 = sand.u32 %s45, 1
        %s261 = smul.addr %s260, 8
        %s262 = scalar_lea.vmem [#allocation2], %s261
        %p263 = pneg %p58
        %p264 = pneg %p55
        %s265 = sand.u32 %s23, 1
        %s266 = scalar_lea.sflag [#allocation6], %s265
        %s267 = sand.u32 %s73, 1
        %s268 = smul.addr %s267, 8
        %s269 = scalar_lea.vmem [#allocation5], %s268
        %p270 = pneg %p86
        %p271 = pneg %p83
        %s272 = sand.u32 %s23, 1
        %s273 = scalar_lea.sflag [#allocation6], %s272
        %s274 = sand.u32 %s101, 1
        %s275 = smul.addr %s274, 8
        %s276 = scalar_lea.vmem [#allocation7], %s275
        %p277 = pneg %p114
        %p278 = pneg %p111
        %p279 = pneg %p142
        %p280 = pneg %p139
        %s281 = sand.u32 %s129, 1
        %s282 = scalar_lea.sflag [#allocation4], %s281
        %s283 = sand.u32 %s129, 1
        %s284 = smul.addr %s283, 16
        %s285 = scalar_lea.vmem [#allocation8], %s284
        %s286 = smul.u32 2, %s28
        %s287 = smul.u32 2, %s28
        %s288 = smul.u32 2, %s28
        %s289 = smul.u32 2, %s28
        %v290 = vld [vmem:[%s235] sm:$0xff]
        %v291 = vsub.f32 1.0, %v290
        %v292 = vadd.f32 %v290, 1e-08
        %v293 = vlog2.pop %v292
        %v294 = vmul.f32 %v293, 0.6931472
        %v295 = vadd.f32 %v291, 1e-08
        %v296 = vlog2.pop %v295
        %v297 = vmul.f32 %v296, 0.6931472
        %v298 = vld [vmem:[%s244] sm:$0xff]
        %v299 = vld [vmem:[%s253] sm:$0xff]
        %v300 = vadd.f32 %v298, 1e-08
        %v301 = vlog2.pop %v300
        %v302 = vmul.f32 %v301, 0.6931472
        %v303 = vsub.f32 0.0, %v302
        %v304 = vadd.f32 %v303, 1e-08
        %v305 = vlog2.pop %v304
        %v306 = vmul.f32 %v305, 0.6931472
        %v307 = vsub.f32 0.0, %v306
        %v308 = vadd.f32 %v299, 1e-08
        %v309 = vlog2.pop %v308
        %v310 = vmul.f32 %v309, 0.6931472
        %v311 = vsub.f32 0.0, %v310
        %v312 = vadd.f32 %v311, 1e-08
        %v313 = vlog2.pop %v312
        %v314 = vmul.f32 %v313, 0.6931472
        %v315 = vsub.f32 0.0, %v314
        %v316 = vadd.f32 %v294, %v307
        %v317 = vadd.f32 %v297, %v315
        %v319 = vcombine.high %v316, %v316
        %vm321 = vcmask 1043456
        %v322 = vsel %vm321, %v316, -inf
        %v323 = vrot.slane %v322, 4
        %v324 = vmax.f32 %v322, %v323
        %v325 = vrot.slane %v324, 2
        %v326 = vmax.f32 %v324, %v325
        %v327 = vrot.slane %v326, 1
        %v328 = vmax.f32 %v326, %v327
        %v329 = vsel %vm321, %v319, -inf
        %v330 = vrot.slane %v329, 4
        %v331 = vmax.f32 %v329, %v330
        %v332 = vrot.slane %v331, 2
        %v333 = vmax.f32 %v331, %v332
        %v334 = vrot.slane %v333, 1
        %v335 = vmax.f32 %v333, %v334
        %v337 = vcombine.high %v317, %v317
        %v339 = vsel %vm321, %v317, -inf
        %v340 = vrot.slane %v339, 4
        %v341 = vmax.f32 %v339, %v340
        %v342 = vrot.slane %v341, 2
        %v343 = vmax.f32 %v341, %v342
        %v344 = vrot.slane %v343, 1
        %v345 = vmax.f32 %v343, %v344
        %v346 = vsel %vm321, %v337, -inf
        %v347 = vrot.slane %v346, 4
        %v348 = vmax.f32 %v346, %v347
        %v349 = vrot.slane %v348, 2
        %v350 = vmax.f32 %v348, %v349
        %v351 = vrot.slane %v350, 1
        %v352 = vmax.f32 %v350, %v351
        %v353 = vmax.f32 %v328, %v345
        %v354 = vmax.f32 %v335, %v352
        %v357 = vcombine.low %v353, %v354
        %v359 = vsub.f32 %v316, %v357
        %v360 = vmul.f32 %v359, 1.442695
        %v361 = vpow.pop %v360
        %v362 = vsub.f32 %v317, %v357
        %v363 = vmul.f32 %v362, 1.442695
        %v364 = vpow.pop %v363
        %v366 = vcombine.high %v361, %v361
        %v368 = vsel %vm321, %v361, 0.0
        %v369 = vrot.slane %v368, 4
        %v370 = vadd.f32 %v368, %v369
        %v371 = vrot.slane %v370, 2
        %v372 = vadd.f32 %v370, %v371
        %v373 = vrot.slane %v372, 1
        %v374 = vadd.f32 %v372, %v373
        %v375 = vsel %vm321, %v366, 0.0
        %v376 = vrot.slane %v375, 4
        %v377 = vadd.f32 %v375, %v376
        %v378 = vrot.slane %v377, 2
        %v379 = vadd.f32 %v377, %v378
        %v380 = vrot.slane %v379, 1
        %v381 = vadd.f32 %v379, %v380
        %v383 = vcombine.high %v364, %v364
        %v385 = vsel %vm321, %v364, 0.0
        %v386 = vrot.slane %v385, 4
        %v387 = vadd.f32 %v385, %v386
        %v388 = vrot.slane %v387, 2
        %v389 = vadd.f32 %v387, %v388
        %v390 = vrot.slane %v389, 1
        %v391 = vadd.f32 %v389, %v390
        %v392 = vsel %vm321, %v383, 0.0
        %v393 = vrot.slane %v392, 4
        %v394 = vadd.f32 %v392, %v393
        %v395 = vrot.slane %v394, 2
        %v396 = vadd.f32 %v394, %v395
        %v397 = vrot.slane %v396, 1
        %v398 = vadd.f32 %v396, %v397
        %v399 = vadd.f32 %v374, %v391
        %v400 = vadd.f32 %v381, %v398
        %v401 = vrcp.pop %v399
        %v402 = vmul.f32 1.0, %v401
        %v403 = vrcp.pop %v400
        %v404 = vmul.f32 1.0, %v403
        %v407 = vcombine.low %v402, %v404
        %v409 = vmul.f32 %v361, %v407
        %v411 = vcombine.high %v409, %v409
        %413 = vst [vmem:[%s285] sm:$0xf] %v409
        %414 = vst [vmem:[%s285 + $0x8] sm:$0xf] %v411
        %v415 = vmul.f32 %v364, %v407
        %v417 = vcombine.low %v415, %v415
        %419 = vst [vmem:[%s285] sm:$0xf0] %v417
        %420 = vst [vmem:[%s285 + $0x8] sm:$0xf0] %v415
        %s421 = sand.u32 %s129, 1
        %s422 = scalar_lea.sflag [#allocation4], %s421
        %s423 = sand.u32 %s129, 1
        %s424 = smul.addr %s423, 16
        %s425 = scalar_lea.vmem [#allocation8], %s424
        // Predicated region
        $region45: #{tpu_custom_call.1} parent=31 // pred_check
          %p426 = pneg %p139
        $region46: #{tpu_custom_call.1} parent=31 // pred_check_branch
          %428 = sbr.rel (%p426) target = $region48
        $region47: #{tpu_custom_call.1} parent=31 // pred_region
          %s429 = smul.u32 2, %s28
          %s431 = ssub.s32 256, 256
          %432 = vsyncadd %s422, %s431
          %s433 = smul.addr %s27, 2
          %s434 = sadd.s32 %s429, %s433
          %s435 = smul.addr %s434, 128
          %s436 = scalar_lea.hbm %s3, %s435
          %s438 = sshll.u32 %s425, 4
          %s439 = int_to_ptr.vmem [resolvable:$true] %s438
          %441 = dma.vmem_to_hbm [thread:$0]  %s439, 256, %s436, %s422
        $region48: #{tpu_custom_call.1} parent=31 // pred_fallthru
          _
      $region32: #{tpu_custom_call.1} parent=5 // pred_fallthru
        _
      %p442 = scmp.le.s32.totalorder 2, %s18
      // Predicated region
      $region49: #{tpu_custom_call.1} parent=5 // pred_check
        %p443 = pneg %p442
      $region50: #{tpu_custom_call.1} parent=5 // pred_check_branch
        %445 = sbr.rel (%p443) target = $region52
      $region51: #{tpu_custom_call.1} parent=5 // pred_region
        %s446 = ssub.s32 %s18, 2
        // Predicated region
        $region53: #{tpu_custom_call.1} parent=51 // pred_check
          %p447 = pneg %p145
        $region54: #{tpu_custom_call.1} parent=51 // pred_check_branch
          %449 = sbr.rel (%p447) target = $region56
        $region55: #{tpu_custom_call.1} parent=51 // pred_region
          %s450 = sand.u32 %s130, 1
          %s451 = scalar_lea.sflag [#allocation4], %s450
          %s452 = sand.u32 %s130, 1
          %s453 = smul.addr %s452, 16
          %s454 = scalar_lea.vmem [#allocation8], %s453
          %455 = dma.done %s451, 256
        $region56: #{tpu_custom_call.1} parent=51 // pred_fallthru
          _
      $region52: #{tpu_custom_call.1} parent=5 // pred_fallthru
        _
    $region6: #{tpu_custom_call.1} parent=1 // loop_footer
      %s22 = sadd.s32 1, %s18
    $region7: #{tpu_custom_call.1} parent=1 // loop_footer_branch
      %17 = sbr.rel target = $region3
    $region8: #{tpu_custom_call.1} parent=1 // loop_exit
      _
    %456 = vsyncpa [#allocation3], 1
    %s457 = scalar_lea.sflag [#allocation3], 1
    %458 = vsyncpa %s457, 1
    %459 = vsyncpa [#allocation6], 1
    %s460 = scalar_lea.sflag [#allocation6], 1
    %461 = vsyncpa %s460, 1
    %462 = vsyncpa [#allocation4], 1
    %s463 = scalar_lea.sflag [#allocation4], 1
    %464 = vsyncpa %s463, 1

</llo_original>
